<compile_context>
chip_gen: v5e
topology: v5e:2x2
jax: 0.10.0
libtpu: 0.0.40
codegen_flags: <defaults>
</compile_context>

<pallas_src>
import jax
import jax.numpy as jnp
from jax import lax
from jax.experimental import pallas as pl
from jax.experimental.pallas import tpu as pltpu


def fc_kernel(x_ref, w_ref, b_ref, o_ref):
    """out[:, n-block] = x @ W[n-block, :].T + b[n-block], K-tiled."""
    k = pl.program_id(1)

    @pl.when(k == 0)
    def _():
        # Seed the resident output block with the broadcast bias.
        o_ref[...] = jnp.broadcast_to(b_ref[...], o_ref.shape).astype(o_ref.dtype)

    # x tile: (B, tk); w tile (native layout): (tn, tk).  Contract K with K.
    o_ref[...] += lax.dot_general(
        x_ref[...],
        w_ref[...],
        dimension_numbers=(((1,), (1,)), ((), ())),
        preferred_element_type=jnp.float32,
    ).astype(o_ref.dtype)


def _tpu_vmem_capacity_bytes():
    """Best-effort physical VMEM query; conservative fallback (v7x per-core)."""
    try:
        info = pltpu.get_tpu_info()
        cap = getattr(info, "vmem_capacity_bytes", None)
        if cap:
            return int(cap)
    except Exception:
        pass
    return 64 << 20


def _choose_n_tile(out_features):
    # Lane-dense N tiles when out_features allows it; otherwise a single
    # full-N block (block dim == full array dim satisfies the (8,128) rule).
    if out_features % 256 == 0 and out_features > 256:
        return 256
    if out_features % 128 == 0 and out_features > 128:
        return 128
    return out_features


def _choose_k_tile(k_total, bytes_per_k_row, budget_bytes):
    """Largest K tile whose double-buffered tiles fit the VMEM budget."""
    max_tk = budget_bytes // (2 * bytes_per_k_row)   # 2x for double buffering
    max_tk = max(128, (max_tk // 128) * 128)
    if k_total <= max_tk:
        return k_total, k_total                      # single K block, no padding
    for tk in range(max_tk, 127, -128):              # largest 128-multiple divisor
        if k_total % tk == 0:
            return tk, k_total
    tk = max_tk                                      # no clean divisor: zero-pad K
    k_padded = ((k_total + tk - 1) // tk) * tk
    return tk, k_padded


def fully_connected(x_nchw, weight, bias):
    """Forward pass of FullyConnectedLayer: x.view(B, -1) @ W.T + b.

    x_nchw : (B, C, H, W) float32
    weight : (out_features, in_features) float32   (native nn.Linear layout)
    bias   : (out_features,) float32
    returns: (B, out_features) float32
    """
    B = x_nchw.shape[0]
    x2d = x_nchw.reshape(B, -1)                      # == torch .view(B, -1)
    in_features = x2d.shape[1]
    out_features, k_w = weight.shape
    assert k_w == in_features, "weight in_features must equal C*H*W"

    tn = _choose_n_tile(out_features)

    # Generation-aware VMEM sizing (v5e/v6e: 128 MiB physical, v7x: 64 MiB).
    vmem_cap = _tpu_vmem_capacity_bytes()
    vmem_limit = min(vmem_cap * 3 // 4, 96 << 20)
    tile_budget = min(vmem_limit // 2, 32 << 20)

    bytes_per_k_row = 4 * (B + tn)                   # f32 x-col + f32 w-col per K
    tk, k_padded = _choose_k_tile(in_features, bytes_per_k_row, tile_budget)

    if k_padded != in_features:
        # Irregular K: pad with zeros (contribute nothing to the dot).
        pad = k_padded - in_features
        x2d = jnp.pad(x2d, ((0, 0), (0, pad)))
        weight = jnp.pad(weight, ((0, 0), (0, pad)))

    b2d = bias.reshape(1, out_features)

    grid = (out_features // tn, k_padded // tk)      # (N parallel, K reduction)

    return pl.pallas_call(
        fc_kernel,
        out_shape=jax.ShapeDtypeStruct((B, out_features), jnp.float32),
        grid_spec=pltpu.PrefetchScalarGridSpec(
            num_scalar_prefetch=0,
            grid=grid,
            in_specs=[
                pl.BlockSpec((B, tk), lambda n, k: (0, k)),    # x tile
                pl.BlockSpec((tn, tk), lambda n, k: (n, k)),   # W tile, native layout
                pl.BlockSpec((1, tn), lambda n, k: (0, n)),    # bias tile
            ],
            out_specs=pl.BlockSpec((B, tn), lambda n, k: (0, n)),
        ),
        compiler_params=pltpu.CompilerParams(
            dimension_semantics=("parallel", "arbitrary"),
            vmem_limit_bytes=vmem_limit,
        ),
    )(x2d, weight, b2d)


if __name__ == "__main__":
    # Small shapes consistent with the module: NCHW conv-style input flattened
    # to in_features = C*H*W before the fully-connected layer.
    B, C, H, W = 2, 4, 16, 16
    in_features = C * H * W          # 1024
    out_features = 32

    key = jax.random.PRNGKey(0)
    kx, kw, kb = jax.random.split(key, 3)

    x = jax.random.normal(kx, (B, C, H, W), dtype=jnp.float32)
    # Deterministic synthetic "weights"/"biases" standing in for the numpy
    # arrays the PyTorch module would have been constructed with.
    weight = jax.random.normal(kw, (out_features, in_features), dtype=jnp.float32) * 0.02
    bias = jax.random.normal(kb, (out_features,), dtype=jnp.float32) * 0.1

    out = fully_connected(x, weight, bias)
    out = jax.block_until_ready(out)

    # Reference check (pure JAX), mirrors torch: x.view(B, -1) @ W.T + b
    ref = x.reshape(B, -1) @ weight.T + bias
    assert out.shape == (B, out_features)
    assert jnp.allclose(out, ref, atol=1e-4, rtol=1e-4), "mismatch vs reference"

    print("KERNEL_OK")
</pallas_src>

<mosaic_0001>
module attributes {stable_mosaic.version = 11 : i64} {
  func.func @fc_kernel(%arg0: i32, %arg1: i32, %arg2: memref<2x1024xf32, #tpu.memory_space<vmem>>, %arg3: memref<32x1024xf32, #tpu.memory_space<vmem>>, %arg4: memref<1x32xf32, #tpu.memory_space<vmem>>, %arg5: memref<2x32xf32, #tpu.memory_space<vmem>>) attributes {dimension_semantics = [#tpu.dimension_semantics<parallel>, #tpu.dimension_semantics<arbitrary>], iteration_bounds = array<i64: 1, 1>, scalar_prefetch = 0 : i64, scratch_operands = 0 : i64, tpu.core_type = #tpu.core_type<tc>, window_params = [{transform_indices = @transform_0, window_bounds = array<i64: 2, 1024>}, {transform_indices = @transform_1, window_bounds = array<i64: 32, 1024>}, {transform_indices = @transform_2, window_bounds = array<i64: 1, 32>}, {transform_indices = @transform_3, window_bounds = array<i64: 2, 32>}]} {
    %c0_i32 = arith.constant 0 : i32
    %0 = arith.cmpi eq, %arg1, %c0_i32 : i32
    %1 = arith.extui %0 : i1 to i32
    %c0_i32_0 = arith.constant 0 : i32
    %2 = arith.cmpi ne, %1, %c0_i32_0 : i32
    scf.if %2 {
      %c0_8 = arith.constant 0 : index
      %c0_9 = arith.constant 0 : index
      %9 = vector.load %arg4[%c0_8, %c0_9] : memref<1x32xf32, #tpu.memory_space<vmem>>, vector<1x32xf32>
      %10 = vector.shape_cast %9 : vector<1x32xf32> to vector<1x32xf32>
      %11 = vector.broadcast %10 : vector<1x32xf32> to vector<2x32xf32>
      %c0_10 = arith.constant 0 : index
      %c0_11 = arith.constant 0 : index
      %12 = vector.load %arg5[%c0_10, %c0_11] : memref<2x32xf32, #tpu.memory_space<vmem>>, vector<2x32xf32>
      tpu.vector_store %arg5[%c0_10, %c0_11], %11 {strides = array<i32>} : memref<2x32xf32, #tpu.memory_space<vmem>>, vector<2x32xf32>,
    } else {
    }
    %c0 = arith.constant 0 : index
    %c0_1 = arith.constant 0 : index
    %3 = vector.load %arg5[%c0, %c0_1] : memref<2x32xf32, #tpu.memory_space<vmem>>, vector<2x32xf32>
    %c0_2 = arith.constant 0 : index
    %c0_3 = arith.constant 0 : index
    %4 = vector.load %arg2[%c0_2, %c0_3] : memref<2x1024xf32, #tpu.memory_space<vmem>>, vector<2x1024xf32>
    %c0_4 = arith.constant 0 : index
    %c0_5 = arith.constant 0 : index
    %5 = vector.load %arg3[%c0_4, %c0_5] : memref<32x1024xf32, #tpu.memory_space<vmem>>, vector<32x1024xf32>
    %cst = arith.constant dense<0.000000e+00> : vector<2x32xf32>
    %6 = tpu.matmul %4, %5, %cst {dimension_numbers = #tpu.dot_dimension_numbers<[1], [1], [0], [0], [0, 0, 1, 0], [], []>} : vector<2x1024xf32>, vector<32x1024xf32>, vector<2x32xf32> -> vector<2x32xf32>
    %7 = arith.addf %3, %6 : vector<2x32xf32>
    %c0_6 = arith.constant 0 : index
    %c0_7 = arith.constant 0 : index
    %8 = vector.load %arg5[%c0_6, %c0_7] : memref<2x32xf32, #tpu.memory_space<vmem>>, vector<2x32xf32>
    tpu.vector_store %arg5[%c0_6, %c0_7], %7 {strides = array<i32>} : memref<2x32xf32, #tpu.memory_space<vmem>>, vector<2x32xf32>,
    return
  }
  func.func @transform_0(%arg0: i32, %arg1: i32) -> (i32, i32) {
    %c0_i32 = arith.constant 0 : i32
    %c0_i32_0 = arith.constant 0 : i32
    return %c0_i32, %arg1 : i32, i32
  }
  func.func @transform_1(%arg0: i32, %arg1: i32) -> (i32, i32) {
    %c0_i32 = arith.constant 0 : i32
    return %arg0, %arg1 : i32, i32
  }
  func.func @transform_2(%arg0: i32, %arg1: i32) -> (i32, i32) {
    %c0_i32 = arith.constant 0 : i32
    %c0_i32_0 = arith.constant 0 : i32
    return %c0_i32, %arg0 : i32, i32
  }
  func.func @transform_3(%arg0: i32, %arg1: i32) -> (i32, i32) {
    %c0_i32 = arith.constant 0 : i32
    %c0_i32_0 = arith.constant 0 : i32
    return %c0_i32, %arg0 : i32, i32
  }
}

</mosaic_0001>

<llo_original>
// kernel: tpu_custom_call.1
$region0: #{tpu_custom_call.1}
  #allocation0 [shape = 'u32[]', space=smem, size = 0x4, offset = 0x4, fixed_abs, tag = 'smem constant byte address 0x4 - core index']
  #allocation1 [shape = 'u32[72,128]{1,0:T(1,128)}', space=vmem, size = 0x9000, scoped, tag = 'internal scratch']
  %s0 = inlined_call_operand.hbm [shape: f32[2,1024], index: 0, kind: input, shape index: {}]
  %s1 = inlined_call_operand.hbm [shape: f32[32,1024], index: 1, kind: input, shape index: {}]
  %s2 = inlined_call_operand.vmem [shape: f32[1,32], index: 2, kind: input, shape index: {}]
  %s3 = inlined_call_operand.hbm [shape: f32[2,32], index: 3, kind: output, shape index: {}]
  %s4 = sld [smem:[#allocation0]]
  $region34: #{tpu_custom_call.1} parent=0
    _
  %s6 = ssub.s32 1, %s4
  %s7 = scalar_select 0, %s6, %s4
  $region1: #{tpu_custom_call.1} parent=0
    #allocation2 [shape = 'u8[8192]{0}', space=vmem, size = 0x2000, scoped, tag = 'input window, operand 0, single buffered']
    #allocation3 [shape = 's32[1]{0}', space=sflag, size = 0x4, scoped, tag = 'scoped memory for tpu_custom_call.1']
    #allocation4 [shape = 's32[1]{0}', space=sflag, size = 0x4, scoped, tag = 'scoped memory for tpu_custom_call.1']
    #allocation5 [shape = 'u8[131072]{0}', space=vmem, size = 0x20000, scoped, tag = 'input window, operand 1, single buffered']
    #allocation6 [shape = 's32[1]{0}', space=sflag, size = 0x4, scoped, tag = 'scoped memory for tpu_custom_call.1']
    #allocation7 [shape = 'u8[1024]{0}', space=vmem, size = 0x400, scoped, tag = 'output window, operand 0, single buffered']
    %8 = vsyncpa [#allocation3], 0
    %9 = vsyncpa [#allocation6], 0
    %10 = vsyncpa [#allocation4], 0
    // Predicated region
    $region2: #{tpu_custom_call.1} parent=1 // pred_check
      _
    $region3: #{tpu_custom_call.1} parent=1 // pred_check_branch
      %12 = sbr.rel (0) target = $region5
    $region4: #{tpu_custom_call.1} parent=1 // pred_region
      %14 = vsyncadd [#allocation3], 0
      %s16 = sshll.u32 %s0, 4
      %s17 = int_to_ptr.hbm [resolvable:$true] %s16
      %s18 = sshll.u32 [#allocation2], 4
      %s19 = int_to_ptr.vmem [resolvable:$true] %s18
      %21 = dma.hbm_to_vmem [thread:$0]  %s17, 256, %s19, [#allocation3]
    $region5: #{tpu_custom_call.1} parent=1 // pred_fallthru
      _
    // Predicated region
    $region6: #{tpu_custom_call.1} parent=1 // pred_check
      _
    $region7: #{tpu_custom_call.1} parent=1 // pred_check_branch
      %23 = sbr.rel (0) target = $region9
    $region8: #{tpu_custom_call.1} parent=1 // pred_region
      %25 = vsyncadd [#allocation6], 0
      %s26 = sshll.u32 %s1, 4
      %s27 = int_to_ptr.hbm [resolvable:$true] %s26
      %s28 = sshll.u32 [#allocation5], 4
      %s29 = int_to_ptr.vmem [resolvable:$true] %s28
      %34 = dma.hbm_to_vmem [thread:$0]  %s27, 4096, %s29, [#allocation6], 1024, 1024, 64
    $region9: #{tpu_custom_call.1} parent=1 // pred_fallthru
      _
    // Predicated region
    $region10: #{tpu_custom_call.1} parent=1 // pred_check
      _
    $region11: #{tpu_custom_call.1} parent=1 // pred_check_branch
      %36 = sbr.rel (0) target = $region13
    $region12: #{tpu_custom_call.1} parent=1 // pred_region
      _
    $region13: #{tpu_custom_call.1} parent=1 // pred_fallthru
      _
    // Predicated region
    $region14: #{tpu_custom_call.1} parent=1 // pred_check
      _
    $region15: #{tpu_custom_call.1} parent=1 // pred_check_branch
      %38 = sbr.rel (0) target = $region17
    $region16: #{tpu_custom_call.1} parent=1 // pred_region
      %40 = dma.done [#allocation3], 256
    $region17: #{tpu_custom_call.1} parent=1 // pred_fallthru
      _
    // Predicated region
    $region18: #{tpu_custom_call.1} parent=1 // pred_check
      _
    $region19: #{tpu_custom_call.1} parent=1 // pred_check_branch
      %42 = sbr.rel (0) target = $region21
    $region20: #{tpu_custom_call.1} parent=1 // pred_region
      %44 = dma.done [#allocation6], 4096
    $region21: #{tpu_custom_call.1} parent=1 // pred_fallthru
      _
    %p45 = scmp.eq.s32.totalorder 0, 0
    // Predicated region
    $region22: #{tpu_custom_call.1} parent=1 // pred_check
      %p46 = pneg %p45
    $region23: #{tpu_custom_call.1} parent=1 // pred_check_branch
      %48 = sbr.rel (%p46) target = $region25
    $region24: #{tpu_custom_call.1} parent=1 // pred_region
      %v49 = vld [vmem:[%s2] sm:$0x1]
      %v51 = vperm.slane %v49, 0
      %vm53 = vcmask 254976
      %54 = vst.msk [vmem:[#allocation7] sm:$0x3] %vm53, %v51
    $region25: #{tpu_custom_call.1} parent=1 // pred_fallthru
      _
    %v55 = vld [vmem:[#allocation7] sm:$0x3]
    %v56 = vld [vmem:[#allocation2] sm:$0xff]
    %v57 = vld [vmem:[#allocation2 + $0x8] sm:$0xff]
    %v58 = vld [vmem:[#allocation5] sm:$0xff]
    %v59 = vld [vmem:[#allocation5 + $0x8] sm:$0xff]
    %v60 = vld [vmem:[#allocation5 + $0x10] sm:$0xff]
    %v61 = vld [vmem:[#allocation5 + $0x18] sm:$0xff]
    %v62 = vld [vmem:[#allocation5 + $0x20] sm:$0xff]
    %v63 = vld [vmem:[#allocation5 + $0x28] sm:$0xff]
    %v64 = vld [vmem:[#allocation5 + $0x30] sm:$0xff]
    %v65 = vld [vmem:[#allocation5 + $0x38] sm:$0xff]
    %v66 = vld [vmem:[#allocation5 + $0x40] sm:$0xff]
    %v67 = vld [vmem:[#allocation5 + $0x48] sm:$0xff]
    %v68 = vld [vmem:[#allocation5 + $0x50] sm:$0xff]
    %v69 = vld [vmem:[#allocation5 + $0x58] sm:$0xff]
    %v70 = vld [vmem:[#allocation5 + $0x60] sm:$0xff]
    %v71 = vld [vmem:[#allocation5 + $0x68] sm:$0xff]
    %v72 = vld [vmem:[#allocation5 + $0x70] sm:$0xff]
    %v73 = vld [vmem:[#allocation5 + $0x78] sm:$0xff]
    %v74 = vld [vmem:[#allocation5 + $0x80] sm:$0xff]
    %v75 = vld [vmem:[#allocation5 + $0x88] sm:$0xff]
    %v76 = vld [vmem:[#allocation5 + $0x90] sm:$0xff]
    %v77 = vld [vmem:[#allocation5 + $0x98] sm:$0xff]
    %v78 = vld [vmem:[#allocation5 + $0xa0] sm:$0xff]
    %v79 = vld [vmem:[#allocation5 + $0xa8] sm:$0xff]
    %v80 = vld [vmem:[#allocation5 + $0xb0] sm:$0xff]
    %v81 = vld [vmem:[#allocation5 + $0xb8] sm:$0xff]
    %v82 = vld [vmem:[#allocation5 + $0xc0] sm:$0xff]
    %v83 = vld [vmem:[#allocation5 + $0xc8] sm:$0xff]
    %v84 = vld [vmem:[#allocation5 + $0xd0] sm:$0xff]
    %v85 = vld [vmem:[#allocation5 + $0xd8] sm:$0xff]
    %v86 = vld [vmem:[#allocation5 + $0xe0] sm:$0xff]
    %v87 = vld [vmem:[#allocation5 + $0xe8] sm:$0xff]
    %v88 = vld [vmem:[#allocation5 + $0xf0] sm:$0xff]
    %v89 = vld [vmem:[#allocation5 + $0xf8] sm:$0xff]
    %92 = vst [vmem:[#allocation1] ss:$4 sm:$0xff] %v56
    %s93 = scalar_lea.vmem [#allocation1], 32
    %94 = vst [vmem:[%s93] ss:$4 sm:$0xff] %v57
    %v95 = vld.sshfl [vmem:[#allocation1] sm:$0xff pattern:$0x73625140]
    %v96 = vld.sshfl [vmem:[#allocation1 + $0x8] sm:$0xff pattern:$0x73625140]
    %v97 = vld.sshfl [vmem:[#allocation1 + $0x10] sm:$0xff pattern:$0x73625140]
    %v98 = vld.sshfl [vmem:[#allocation1 + $0x18] sm:$0xff pattern:$0x73625140]
    %v99 = vld.sshfl [vmem:[#allocation1 + $0x20] sm:$0xff pattern:$0x73625140]
    %v100 = vld.sshfl [vmem:[#allocation1 + $0x28] sm:$0xff pattern:$0x73625140]
    %v101 = vld.sshfl [vmem:[#allocation1 + $0x30] sm:$0xff pattern:$0x73625140]
    %v102 = vld.sshfl [vmem:[#allocation1 + $0x38] sm:$0xff pattern:$0x73625140]
    %111 = vmatpush.xpose.msra.mxu0 0.0
    %112 = vmatpush.xpose.msra.mxu0 0.0
    %113 = vmatpush.xpose.msra.mxu0 0.0
    %114 = vmatpush.xpose.msra.mxu0 0.0
    %115 = vmatpush.xpose.msra.mxu0 0.0
    %116 = vmatpush.xpose.msra.mxu0 0.0
    %117 = vmatpush.xpose.msra.mxu0 0.0
    %118 = vmatpush.xpose.msra.mxu0 0.0
    %119 = vmatpush.xpose.msra.mxu0 0.0
    %120 = vmatpush.xpose.msra.mxu0 0.0
    %121 = vmatpush.xpose.msra.mxu0 0.0
    %122 = vmatpush.xpose.msra.mxu0 0.0
    %123 = vmatpush.xpose.msra.mxu0 %v82
    %124 = vmatpush.xpose.msra.mxu0 %v74
    %125 = vmatpush.xpose.msra.mxu0 %v66
    %126 = vmatpush.xpose.msra.mxu0 %v58
    %127 = vmatmul.f32.gmra.mxu0 %v95
    %v128 = vpop.f32.mrf.mxu0
    %v129 = vadd.f32 0.0, %v128
    %130 = vdwg.mxu0
    %131 = vmatpush.xpose.msra.mxu0 0.0
    %132 = vmatpush.xpose.msra.mxu0 0.0
    %133 = vmatpush.xpose.msra.mxu0 0.0
    %134 = vmatpush.xpose.msra.mxu0 0.0
    %135 = vmatpush.xpose.msra.mxu0 0.0
    %136 = vmatpush.xpose.msra.mxu0 0.0
    %137 = vmatpush.xpose.msra.mxu0 0.0
    %138 = vmatpush.xpose.msra.mxu0 0.0
    %139 = vmatpush.xpose.msra.mxu0 0.0
    %140 = vmatpush.xpose.msra.mxu0 0.0
    %141 = vmatpush.xpose.msra.mxu0 0.0
    %142 = vmatpush.xpose.msra.mxu0 0.0
    %143 = vmatpush.xpose.msra.mxu0 %v83
    %144 = vmatpush.xpose.msra.mxu0 %v75
    %145 = vmatpush.xpose.msra.mxu0 %v67
    %146 = vmatpush.xpose.msra.mxu0 %v59
    %147 = vmatmul.f32.gmra.mxu0 %v96
    %v148 = vpop.f32.mrf.mxu0
    %v149 = vadd.f32 %v129, %v148
    %150 = vdwg.mxu0
    %151 = vmatpush.xpose.msra.mxu0 0.0
    %152 = vmatpush.xpose.msra.mxu0 0.0
    %153 = vmatpush.xpose.msra.mxu0 0.0
    %154 = vmatpush.xpose.msra.mxu0 0.0
    %155 = vmatpush.xpose.msra.mxu0 0.0
    %156 = vmatpush.xpose.msra.mxu0 0.0
    %157 = vmatpush.xpose.msra.mxu0 0.0
    %158 = vmatpush.xpose.msra.mxu0 0.0
    %159 = vmatpush.xpose.msra.mxu0 0.0
    %160 = vmatpush.xpose.msra.mxu0 0.0
    %161 = vmatpush.xpose.msra.mxu0 0.0
    %162 = vmatpush.xpose.msra.mxu0 0.0
    %163 = vmatpush.xpose.msra.mxu0 %v84
    %164 = vmatpush.xpose.msra.mxu0 %v76
    %165 = vmatpush.xpose.msra.mxu0 %v68
    %166 = vmatpush.xpose.msra.mxu0 %v60
    %167 = vmatmul.f32.gmra.mxu0 %v97
    %v168 = vpop.f32.mrf.mxu0
    %v169 = vadd.f32 %v149, %v168
    %170 = vdwg.mxu0
    %171 = vmatpush.xpose.msra.mxu0 0.0
    %172 = vmatpush.xpose.msra.mxu0 0.0
    %173 = vmatpush.xpose.msra.mxu0 0.0
    %174 = vmatpush.xpose.msra.mxu0 0.0
    %175 = vmatpush.xpose.msra.mxu0 0.0
    %176 = vmatpush.xpose.msra.mxu0 0.0
    %177 = vmatpush.xpose.msra.mxu0 0.0
    %178 = vmatpush.xpose.msra.mxu0 0.0
    %179 = vmatpush.xpose.msra.mxu0 0.0
    %180 = vmatpush.xpose.msra.mxu0 0.0
    %181 = vmatpush.xpose.msra.mxu0 0.0
    %182 = vmatpush.xpose.msra.mxu0 0.0
    %183 = vmatpush.xpose.msra.mxu0 %v85
    %184 = vmatpush.xpose.msra.mxu0 %v77
    %185 = vmatpush.xpose.msra.mxu0 %v69
    %186 = vmatpush.xpose.msra.mxu0 %v61
    %187 = vmatmul.f32.gmra.mxu0 %v98
    %v188 = vpop.f32.mrf.mxu0
    %v189 = vadd.f32 %v169, %v188
    %190 = vdwg.mxu0
    %191 = vmatpush.xpose.msra.mxu0 0.0
    %192 = vmatpush.xpose.msra.mxu0 0.0
    %193 = vmatpush.xpose.msra.mxu0 0.0
    %194 = vmatpush.xpose.msra.mxu0 0.0
    %195 = vmatpush.xpose.msra.mxu0 0.0
    %196 = vmatpush.xpose.msra.mxu0 0.0
    %197 = vmatpush.xpose.msra.mxu0 0.0
    %198 = vmatpush.xpose.msra.mxu0 0.0
    %199 = vmatpush.xpose.msra.mxu0 0.0
    %200 = vmatpush.xpose.msra.mxu0 0.0
    %201 = vmatpush.xpose.msra.mxu0 0.0
    %202 = vmatpush.xpose.msra.mxu0 0.0
    %203 = vmatpush.xpose.msra.mxu0 %v86
    %204 = vmatpush.xpose.msra.mxu0 %v78
    %205 = vmatpush.xpose.msra.mxu0 %v70
    %206 = vmatpush.xpose.msra.mxu0 %v62
    %207 = vmatmul.f32.gmra.mxu0 %v99
    %v208 = vpop.f32.mrf.mxu0
    %v209 = vadd.f32 %v189, %v208
    %210 = vdwg.mxu0
    %211 = vmatpush.xpose.msra.mxu0 0.0
    %212 = vmatpush.xpose.msra.mxu0 0.0
    %213 = vmatpush.xpose.msra.mxu0 0.0
    %214 = vmatpush.xpose.msra.mxu0 0.0
    %215 = vmatpush.xpose.msra.mxu0 0.0
    %216 = vmatpush.xpose.msra.mxu0 0.0
    %217 = vmatpush.xpose.msra.mxu0 0.0
    %218 = vmatpush.xpose.msra.mxu0 0.0
    %219 = vmatpush.xpose.msra.mxu0 0.0
    %220 = vmatpush.xpose.msra.mxu0 0.0
    %221 = vmatpush.xpose.msra.mxu0 0.0
    %222 = vmatpush.xpose.msra.mxu0 0.0
    %223 = vmatpush.xpose.msra.mxu0 %v87
    %224 = vmatpush.xpose.msra.mxu0 %v79
    %225 = vmatpush.xpose.msra.mxu0 %v71
    %226 = vmatpush.xpose.msra.mxu0 %v63
    %227 = vmatmul.f32.gmra.mxu0 %v100
    %v228 = vpop.f32.mrf.mxu0
    %v229 = vadd.f32 %v209, %v228
    %230 = vdwg.mxu0
    %231 = vmatpush.xpose.msra.mxu0 0.0
    %232 = vmatpush.xpose.msra.mxu0 0.0
    %233 = vmatpush.xpose.msra.mxu0 0.0
    %234 = vmatpush.xpose.msra.mxu0 0.0
    %235 = vmatpush.xpose.msra.mxu0 0.0
    %236 = vmatpush.xpose.msra.mxu0 0.0
    %237 = vmatpush.xpose.msra.mxu0 0.0
    %238 = vmatpush.xpose.msra.mxu0 0.0
    %239 = vmatpush.xpose.msra.mxu0 0.0
    %240 = vmatpush.xpose.msra.mxu0 0.0
    %241 = vmatpush.xpose.msra.mxu0 0.0
    %242 = vmatpush.xpose.msra.mxu0 0.0
    %243 = vmatpush.xpose.msra.mxu0 %v88
    %244 = vmatpush.xpose.msra.mxu0 %v80
    %245 = vmatpush.xpose.msra.mxu0 %v72
    %246 = vmatpush.xpose.msra.mxu0 %v64
    %247 = vmatmul.f32.gmra.mxu0 %v101
    %v248 = vpop.f32.mrf.mxu0
    %v249 = vadd.f32 %v229, %v248
    %250 = vdwg.mxu0
    %251 = vmatpush.xpose.msra.mxu0 0.0
    %252 = vmatpush.xpose.msra.mxu0 0.0
    %253 = vmatpush.xpose.msra.mxu0 0.0
    %254 = vmatpush.xpose.msra.mxu0 0.0
    %255 = vmatpush.xpose.msra.mxu0 0.0
    %256 = vmatpush.xpose.msra.mxu0 0.0
    %257 = vmatpush.xpose.msra.mxu0 0.0
    %258 = vmatpush.xpose.msra.mxu0 0.0
    %259 = vmatpush.xpose.msra.mxu0 0.0
    %260 = vmatpush.xpose.msra.mxu0 0.0
    %261 = vmatpush.xpose.msra.mxu0 0.0
    %262 = vmatpush.xpose.msra.mxu0 0.0
    %263 = vmatpush.xpose.msra.mxu0 %v89
    %264 = vmatpush.xpose.msra.mxu0 %v81
    %265 = vmatpush.xpose.msra.mxu0 %v73
    %266 = vmatpush.xpose.msra.mxu0 %v65
    %267 = vmatmul.f32.gmra.mxu0 %v102
    %v268 = vpop.f32.mrf.mxu0
    %v269 = vadd.f32 %v249, %v268
    %270 = vdwg.mxu0
    %v271 = vadd.f32 %v55, %v269
    %vm272 = vcmask 254976
    %273 = vst.msk [vmem:[#allocation7] sm:$0x3] %vm272, %v271
    // Predicated region
    $region26: #{tpu_custom_call.1} parent=1 // pred_check
      _
    $region27: #{tpu_custom_call.1} parent=1 // pred_check_branch
      %275 = sbr.rel (0) target = $region29
    $region28: #{tpu_custom_call.1} parent=1 // pred_region
      %277 = vsyncadd [#allocation4], 0
      %s279 = sshll.u32 [#allocation7], 4
      %s280 = int_to_ptr.vmem [resolvable:$true] %s279
      %s281 = sshll.u32 %s3, 4
      %s282 = int_to_ptr.hbm [resolvable:$true] %s281
      %284 = dma.vmem_to_hbm [thread:$0]  %s280, 32, %s282, [#allocation4]
    $region29: #{tpu_custom_call.1} parent=1 // pred_fallthru
      _
    // Predicated region
    $region30: #{tpu_custom_call.1} parent=1 // pred_check
      _
    $region31: #{tpu_custom_call.1} parent=1 // pred_check_branch
      %286 = sbr.rel (0) target = $region33
    $region32: #{tpu_custom_call.1} parent=1 // pred_region
      %288 = dma.done [#allocation4], 32
    $region33: #{tpu_custom_call.1} parent=1 // pred_fallthru
      _
    %289 = vsyncpa [#allocation3], 1
    %290 = vsyncpa [#allocation6], 1
    %291 = vsyncpa [#allocation4], 1

</llo_original>
